<compile_context>
chip_gen: v6e
topology: v6e:2x2x1
jax: 0.10.0
libtpu: 0.0.40
codegen_flags: <defaults>
</compile_context>

<pallas_src>
import functools

import jax
import jax.numpy as jnp
from jax import lax
from jax.experimental import pallas as pl
from jax.experimental.pallas import tpu as pltpu


def _round_up(x, m):
    return (x + m - 1) // m * m


def _exp_dtype_for_backend():
    """bf16 EUP exists on v6e/v7x; keep f32 exponentials on v5e and older."""
    try:
        kind = jax.devices()[0].device_kind.lower()
    except Exception:
        return jnp.float32
    return jnp.bfloat16 if any(t in kind for t in ("v6", "v7", "7x")) else jnp.float32


def _fused_head_kernel(xq_ref, xkv_ref, w_ref, o_ref,
                       q_sc, k_sc, v_sc, m_sc, l_sc, acc_sc,
                       *, ratio, exp_dtype):
    # xq_ref : (1, TQ, Cp) bf16   rows of x for this q-tile
    # xkv_ref: (1, TK, Cp) bf16   rows of x for the current band kv-block
    # w_ref  : (Cp, 3*Cp) bf16    [Wq*scale | Wk | Wv], resident in VMEM
    # o_ref  : (1, TQ, Cp) bf16
    qi = pl.program_id(1)
    ki = pl.program_id(2)
    cp = w_ref.shape[0]

    band_lo = qi * ratio          # first kv block that needs the causal mask
    band_hi = band_lo + ratio     # first fully-masked (dead) kv block

    # ---- per-q-tile init: project Q tile, reset online-softmax state ----------
    @pl.when(ki == 0)
    def _():
        q = jnp.dot(xq_ref[0], w_ref[:, 0:cp], preferred_element_type=jnp.float32)
        q_sc[...] = q.astype(q_sc.dtype)          # scale already folded into Wq
        m_sc[...] = jnp.full(m_sc.shape, -jnp.inf, m_sc.dtype)
        l_sc[...] = jnp.zeros(l_sc.shape, l_sc.dtype)
        acc_sc[...] = jnp.zeros(acc_sc.shape, acc_sc.dtype)

    def _flash_update(k, v, apply_causal_mask):
        q = q_sc[...]                             # (TQ, Cp) bf16
        # q @ k^T without materializing a transpose: contract the feature dims.
        s = lax.dot_general(q, k, dimension_numbers=(((1,), (1,)), ((), ())),
                            preferred_element_type=jnp.float32)   # (TQ, TK) f32
        if apply_causal_mask:                     # only band blocks need the mask
            tq, tk = s.shape
            row = qi * tq + lax.broadcasted_iota(jnp.int32, (tq, tk), 0)
            col = ki * tk + lax.broadcasted_iota(jnp.int32, (tq, tk), 1)
            s = jnp.where(col <= row, s, -jnp.inf)

        m_prev = m_sc[...]
        m_new = jnp.maximum(m_prev, jnp.max(s, axis=-1, keepdims=True))
        alpha = jnp.exp((m_prev - m_new).astype(exp_dtype)).astype(jnp.float32)
        p = jnp.exp((s - m_new).astype(exp_dtype))
        l_sc[...] = alpha * l_sc[...] + jnp.sum(p, axis=-1, keepdims=True,
                                                dtype=jnp.float32)
        acc_sc[...] = alpha * acc_sc[...] + jnp.dot(
            p.astype(v.dtype), v, preferred_element_type=jnp.float32)
        m_sc[...] = m_new

    # ---- below-diagonal blocks: K/V already cached, no mask needed ------------
    @pl.when(ki < band_lo)
    def _():
        _flash_update(k_sc[ki], v_sc[ki], apply_causal_mask=False)

    # ---- diagonal-band blocks: first use of this kv block -> project & cache --
    @pl.when(jnp.logical_and(ki >= band_lo, ki < band_hi))
    def _():
        x = xkv_ref[0]                            # (TK, Cp) bf16
        kv = jnp.dot(x, w_ref[:, cp:3 * cp],
                     preferred_element_type=jnp.float32).astype(jnp.bfloat16)
        k = kv[:, :cp]
        v = kv[:, cp:]
        k_sc[ki] = k
        v_sc[ki] = v
        _flash_update(k, v, apply_causal_mask=True)

    # Blocks with ki >= band_hi are fully masked: no compute, no DMA (clamped map).

    # ---- last live block for this q-tile: normalize & emit --------------------
    @pl.when(ki == band_hi - 1)
    def _():
        inv_l = pl.reciprocal(l_sc[...], approx=True)   # EUP, deferred normalization
        o_ref[0] = (acc_sc[...] * inv_l).astype(o_ref.dtype)


def head_forward(x, w_key, w_query, w_value):
    """Causal single-head attention.  x: (B, T, C); w_*: PyTorch (out, in) = (C, C)."""
    B, T, C = x.shape
    c_pad = _round_up(C, 128)                     # lane-dense feature dim

    # Tile sizes: multiples of 16 rows (bf16 packs 16 rows/vreg). For long
    # sequences use a larger q-tile (256) than kv-tile (128): K/V reuse scales
    # with T / TQ while the (TQ, TK) f32 score tile stays vreg-friendly.
    if T <= 128:
        t_kv = _round_up(T, 16)
        t_q = t_kv
    else:
        t_kv = 128
        t_q = 256
    ratio = t_q // t_kv
    t_pad = _round_up(T, t_q)
    n_q = t_pad // t_q
    n_kv = t_pad // t_kv

    scale = 1.0 / (float(C) ** 0.5)               # original C, as in the PyTorch module

    # One-time weight prep: transpose to (in, out), zero-pad to (Cp, Cp), fold the
    # softmax scale into Wq, fuse into a single resident (Cp, 3*Cp) bf16 weight.
    def _prep(w):
        return jnp.pad(w.T.astype(jnp.float32), ((0, c_pad - C), (0, c_pad - C)))

    w_qkv = jnp.concatenate(
        [_prep(w_query) * scale, _prep(w_key), _prep(w_value)], axis=1
    ).astype(jnp.bfloat16)

    x_p = jnp.pad(x, ((0, 0), (0, t_pad - T), (0, c_pad - C))).astype(jnp.bfloat16)

    # x index_map for the K/V stream: clamp the kv block index to the live causal
    # band [qi*ratio, (qi+1)*ratio - 1]. Pallas skips the copy whenever the block
    # index is unchanged from the previous grid step, so dead (fully-masked)
    # blocks and already-cached blocks move no data from HBM.
    def _xkv_index_map(b, qi, ki):
        lo = qi * ratio
        return b, jnp.maximum(jnp.minimum(ki, lo + ratio - 1), lo), 0

    kernel = functools.partial(_fused_head_kernel, ratio=ratio,
                               exp_dtype=_exp_dtype_for_backend())

    out_p = pl.pallas_call(
        kernel,
        out_shape=jax.ShapeDtypeStruct((B, t_pad, c_pad), jnp.bfloat16),
        grid_spec=pltpu.PrefetchScalarGridSpec(
            num_scalar_prefetch=0,
            grid=(B, n_q, n_kv),
            in_specs=[
                pl.BlockSpec((1, t_q, c_pad), lambda b, qi, ki: (b, qi, 0)),   # x (Q rows)
                pl.BlockSpec((1, t_kv, c_pad), _xkv_index_map),                # x (K/V rows)
                pl.BlockSpec((c_pad, 3 * c_pad), lambda b, qi, ki: (0, 0)),    # fused weights
            ],
            out_specs=pl.BlockSpec((1, t_q, c_pad), lambda b, qi, ki: (b, qi, 0)),
            scratch_shapes=[
                pltpu.VMEM((t_q, c_pad), jnp.bfloat16),          # Q tile (scale folded in)
                pltpu.VMEM((n_kv, t_kv, c_pad), jnp.bfloat16),   # cached K (whole sequence)
                pltpu.VMEM((n_kv, t_kv, c_pad), jnp.bfloat16),   # cached V (whole sequence)
                pltpu.VMEM((t_q, 1), jnp.float32),               # running max m
                pltpu.VMEM((t_q, 1), jnp.float32),               # running denom l
                pltpu.VMEM((t_q, c_pad), jnp.float32),           # unnormalized accumulator
            ],
        ),
        # The q axis carries state (K/V cache is filled on the diagonal band and
        # re-used by later q-tiles), so it must be "arbitrary"; the batch axis stays
        # parallel for megacore. The K/V cache is ~0.5 MiB per 1K tokens at Cp=128,
        # comfortably within the default scoped VMEM limit for typical contexts.
        compiler_params=pltpu.CompilerParams(
            dimension_semantics=("parallel", "arbitrary", "arbitrary"),
        ),
    )(x_p, x_p, w_qkv)

    return out_p[:, :T, :C].astype(x.dtype)


def head_reference(x, w_key, w_query, w_value):
    """Pure-JAX f32 reference mirroring the PyTorch forward."""
    B, T, C = x.shape
    k = x @ w_key.T
    q = x @ w_query.T
    v = x @ w_value.T
    wei = (q @ jnp.swapaxes(k, -2, -1)) * (C ** -0.5)
    mask = jnp.tril(jnp.ones((T, T), dtype=bool))
    wei = jnp.where(mask, wei, -jnp.inf)
    wei = jax.nn.softmax(wei, axis=-1)
    return wei @ v


if __name__ == "__main__":
    B, T, C = 2, 8, 32  # batch=2, seq=8, n_embd=32

    key = jax.random.PRNGKey(0)
    kx, kk, kq, kv = jax.random.split(key, 4)

    x = jax.random.normal(kx, (B, T, C), dtype=jnp.float32)
    # Deterministic "Linear(n_embd, n_embd, bias=False)" weights, (out, in).
    bound = 1.0 / (C ** 0.5)
    w_key = jax.random.uniform(kk, (C, C), jnp.float32, -bound, bound)
    w_query = jax.random.uniform(kq, (C, C), jnp.float32, -bound, bound)
    w_value = jax.random.uniform(kv, (C, C), jnp.float32, -bound, bound)

    out = head_forward(x, w_key, w_query, w_value)
    out = jax.block_until_ready(out)

    ref = head_reference(x, w_key, w_query, w_value)
    assert out.shape == (B, T, C)
    # MXU operands / output are bf16 -> compare against the f32 reference at bf16 tolerance.
    assert jnp.allclose(out, ref, atol=5e-2, rtol=5e-2), "mismatch vs reference"

    print("KERNEL_OK")
</pallas_src>

<mosaic_0001>
module attributes {stable_mosaic.version = 11 : i64} {
  func.func @_fused_head_kernel(%arg0: i32, %arg1: i32, %arg2: i32, %arg3: memref<1x16x128xbf16, #tpu.memory_space<vmem>>, %arg4: memref<1x16x128xbf16, #tpu.memory_space<vmem>>, %arg5: memref<128x384xbf16, #tpu.memory_space<vmem>>, %arg6: memref<1x16x128xbf16, #tpu.memory_space<vmem>>, %arg7: memref<16x128xbf16, #tpu.memory_space<vmem>>, %arg8: memref<1x16x128xbf16, #tpu.memory_space<vmem>>, %arg9: memref<1x16x128xbf16, #tpu.memory_space<vmem>>, %arg10: memref<16x1xf32, #tpu.memory_space<vmem>>, %arg11: memref<16x1xf32, #tpu.memory_space<vmem>>, %arg12: memref<16x128xf32, #tpu.memory_space<vmem>>) attributes {dimension_semantics = [#tpu.dimension_semantics<parallel>, #tpu.dimension_semantics<arbitrary>, #tpu.dimension_semantics<arbitrary>], iteration_bounds = array<i64: 2, 1, 1>, scalar_prefetch = 0 : i64, scratch_operands = 6 : i64, tpu.core_type = #tpu.core_type<tc>, window_params = [{transform_indices = @transform_0, window_bounds = array<i64: 1, 16, 128>}, {transform_indices = @transform_1, window_bounds = array<i64: 1, 16, 128>}, {pipeline_mode = #tpu.pipeline_mode<synchronous>, transform_indices = @transform_2, window_bounds = array<i64: 128, 384>}, {transform_indices = @transform_3, window_bounds = array<i64: 1, 16, 128>}]} {
    %c1_i32 = arith.constant 1 : i32
    %0 = arith.muli %arg1, %c1_i32 : i32
    %c1_i32_0 = arith.constant 1 : i32
    %1 = arith.addi %0, %c1_i32_0 : i32
    %c0_i32 = arith.constant 0 : i32
    %2 = arith.cmpi eq, %arg2, %c0_i32 : i32
    %3 = arith.extui %2 : i1 to i32
    %c0_i32_1 = arith.constant 0 : i32
    %4 = arith.cmpi ne, %3, %c0_i32_1 : i32
    scf.if %4 {
      %c0 = arith.constant 0 : index
      %c0_6 = arith.constant 0 : index
      %c0_7 = arith.constant 0 : index
      %17 = vector.load %arg3[%c0, %c0_6, %c0_7] : memref<1x16x128xbf16, #tpu.memory_space<vmem>>, vector<1x16x128xbf16>
      %18 = vector.shape_cast %17 : vector<1x16x128xbf16> to vector<16x128xbf16>
      %c0_8 = arith.constant 0 : index
      %c0_9 = arith.constant 0 : index
      %19 = vector.load %arg5[%c0_8, %c0_9] : memref<128x384xbf16, #tpu.memory_space<vmem>>, vector<128x128xbf16>
      %cst = arith.constant dense<0.000000e+00> : vector<16x128xf32>
      %20 = tpu.matmul %18, %19, %cst {dimension_numbers = #tpu.dot_dimension_numbers<[1], [0], [0], [1], [0, 0, 1, 1], [], []>} : vector<16x128xbf16>, vector<128x128xbf16>, vector<16x128xf32> -> vector<16x128xf32>
      %21 = arith.truncf %20 : vector<16x128xf32> to vector<16x128xbf16>
      %c0_10 = arith.constant 0 : index
      %c0_11 = arith.constant 0 : index
      %22 = vector.load %arg7[%c0_10, %c0_11] : memref<16x128xbf16, #tpu.memory_space<vmem>>, vector<16x128xbf16>
      tpu.vector_store %arg7[%c0_10, %c0_11], %21 {strides = array<i32>} : memref<16x128xbf16, #tpu.memory_space<vmem>>, vector<16x128xbf16>,
      %cst_12 = arith.constant 0xFF800000 : f32
      %23 = vector.broadcast %cst_12 : f32 to vector<16x1xf32>
      %c0_13 = arith.constant 0 : index
      %c0_14 = arith.constant 0 : index
      %24 = vector.load %arg10[%c0_13, %c0_14] : memref<16x1xf32, #tpu.memory_space<vmem>>, vector<16x1xf32>
      tpu.vector_store %arg10[%c0_13, %c0_14], %23 {strides = array<i32>} : memref<16x1xf32, #tpu.memory_space<vmem>>, vector<16x1xf32>,
      %cst_15 = arith.constant 0.000000e+00 : f32
      %25 = vector.broadcast %cst_15 : f32 to vector<16x1xf32>
      %c0_16 = arith.constant 0 : index
      %c0_17 = arith.constant 0 : index
      %26 = vector.load %arg11[%c0_16, %c0_17] : memref<16x1xf32, #tpu.memory_space<vmem>>, vector<16x1xf32>
      tpu.vector_store %arg11[%c0_16, %c0_17], %25 {strides = array<i32>} : memref<16x1xf32, #tpu.memory_space<vmem>>, vector<16x1xf32>,
      %cst_18 = arith.constant 0.000000e+00 : f32
      %27 = vector.broadcast %cst_18 : f32 to vector<16x128xf32>
      %c0_19 = arith.constant 0 : index
      %c0_20 = arith.constant 0 : index
      %28 = vector.load %arg12[%c0_19, %c0_20] : memref<16x128xf32, #tpu.memory_space<vmem>>, vector<16x128xf32>
      tpu.vector_store %arg12[%c0_19, %c0_20], %27 {strides = array<i32>} : memref<16x128xf32, #tpu.memory_space<vmem>>, vector<16x128xf32>,
    } else {
    }
    %5 = arith.cmpi slt, %arg2, %0 : i32
    %6 = arith.extui %5 : i1 to i32
    %c0_i32_2 = arith.constant 0 : i32
    %7 = arith.cmpi ne, %6, %c0_i32_2 : i32
    scf.if %7 {
      %17 = arith.index_cast %arg2 : i32 to index
      %c0 = arith.constant 0 : index
      %c0_6 = arith.constant 0 : index
      %18 = vector.load %arg8[%17, %c0, %c0_6] : memref<1x16x128xbf16, #tpu.memory_space<vmem>>, vector<1x16x128xbf16>
      %19 = vector.shape_cast %18 : vector<1x16x128xbf16> to vector<16x128xbf16>
      %20 = arith.index_cast %arg2 : i32 to index
      %c0_7 = arith.constant 0 : index
      %c0_8 = arith.constant 0 : index
      %21 = vector.load %arg9[%20, %c0_7, %c0_8] : memref<1x16x128xbf16, #tpu.memory_space<vmem>>, vector<1x16x128xbf16>
      %22 = vector.shape_cast %21 : vector<1x16x128xbf16> to vector<16x128xbf16>
      %c0_9 = arith.constant 0 : index
      %c0_10 = arith.constant 0 : index
      %23 = vector.load %arg7[%c0_9, %c0_10] : memref<16x128xbf16, #tpu.memory_space<vmem>>, vector<16x128xbf16>
      %cst = arith.constant dense<0.000000e+00> : vector<16x16xf32>
      %24 = tpu.matmul %23, %19, %cst {dimension_numbers = #tpu.dot_dimension_numbers<[1], [1], [0], [0], [0, 0, 1, 0], [], []>} : vector<16x128xbf16>, vector<16x128xbf16>, vector<16x16xf32> -> vector<16x16xf32>
      %c0_11 = arith.constant 0 : index
      %c0_12 = arith.constant 0 : index
      %25 = vector.load %arg10[%c0_11, %c0_12] : memref<16x1xf32, #tpu.memory_space<vmem>>, vector<16x1xf32>
      %cst_13 = arith.constant dense<0xFF800000> : vector<16xf32>
      %26 = vector.multi_reduction <maximumf>, %24, %cst_13 [1] : vector<16x16xf32> to vector<16xf32>
      %27 = vector.shape_cast %26 : vector<16xf32> to vector<16x1xf32>
      %28 = arith.maximumf %25, %27 : vector<16x1xf32>
      %29 = arith.subf %25, %28 : vector<16x1xf32>
      %30 = math.exp %29 : vector<16x1xf32>
      %31 = vector.broadcast %28 : vector<16x1xf32> to vector<16x16xf32>
      %32 = arith.subf %24, %31 : vector<16x16xf32>
      %33 = math.exp %32 : vector<16x16xf32>
      %c0_14 = arith.constant 0 : index
      %c0_15 = arith.constant 0 : index
      %34 = vector.load %arg11[%c0_14, %c0_15] : memref<16x1xf32, #tpu.memory_space<vmem>>, vector<16x1xf32>
      %35 = arith.mulf %30, %34 : vector<16x1xf32>
      %cst_16 = arith.constant dense<0.000000e+00> : vector<16xf32>
      %36 = vector.multi_reduction <add>, %33, %cst_16 [1] : vector<16x16xf32> to vector<16xf32>
      %37 = vector.shape_cast %36 : vector<16xf32> to vector<16x1xf32>
      %38 = arith.addf %35, %37 : vector<16x1xf32>
      %c0_17 = arith.constant 0 : index
      %c0_18 = arith.constant 0 : index
      %39 = vector.load %arg11[%c0_17, %c0_18] : memref<16x1xf32, #tpu.memory_space<vmem>>, vector<16x1xf32>
      tpu.vector_store %arg11[%c0_17, %c0_18], %38 {strides = array<i32>} : memref<16x1xf32, #tpu.memory_space<vmem>>, vector<16x1xf32>,
      %c0_19 = arith.constant 0 : index
      %c0_20 = arith.constant 0 : index
      %40 = vector.load %arg12[%c0_19, %c0_20] : memref<16x128xf32, #tpu.memory_space<vmem>>, vector<16x128xf32>
      %41 = vector.broadcast %30 : vector<16x1xf32> to vector<16x128xf32>
      %42 = arith.mulf %41, %40 : vector<16x128xf32>
      %43 = arith.truncf %33 : vector<16x16xf32> to vector<16x16xbf16>
      %cst_21 = arith.constant dense<0.000000e+00> : vector<16x128xf32>
      %44 = tpu.matmul %43, %22, %cst_21 {dimension_numbers = #tpu.dot_dimension_numbers<[1], [0], [0], [1], [0, 0, 1, 1], [], []>} : vector<16x16xbf16>, vector<16x128xbf16>, vector<16x128xf32> -> vector<16x128xf32>
      %45 = arith.addf %42, %44 : vector<16x128xf32>
      %c0_22 = arith.constant 0 : index
      %c0_23 = arith.constant 0 : index
      %46 = vector.load %arg12[%c0_22, %c0_23] : memref<16x128xf32, #tpu.memory_space<vmem>>, vector<16x128xf32>
      tpu.vector_store %arg12[%c0_22, %c0_23], %45 {strides = array<i32>} : memref<16x128xf32, #tpu.memory_space<vmem>>, vector<16x128xf32>,
      %c0_24 = arith.constant 0 : index
      %c0_25 = arith.constant 0 : index
      %47 = vector.load %arg10[%c0_24, %c0_25] : memref<16x1xf32, #tpu.memory_space<vmem>>, vector<16x1xf32>
      tpu.vector_store %arg10[%c0_24, %c0_25], %28 {strides = array<i32>} : memref<16x1xf32, #tpu.memory_space<vmem>>, vector<16x1xf32>,
    } else {
    }
    %8 = arith.cmpi sge, %arg2, %0 : i32
    %9 = arith.cmpi slt, %arg2, %1 : i32
    %10 = arith.andi %8, %9 : i1
    %11 = arith.extui %10 : i1 to i32
    %c0_i32_3 = arith.constant 0 : i32
    %12 = arith.cmpi ne, %11, %c0_i32_3 : i32
    scf.if %12 {
      %c0 = arith.constant 0 : index
      %c0_6 = arith.constant 0 : index
      %c0_7 = arith.constant 0 : index
      %17 = vector.load %arg4[%c0, %c0_6, %c0_7] : memref<1x16x128xbf16, #tpu.memory_space<vmem>>, vector<1x16x128xbf16>
      %18 = vector.shape_cast %17 : vector<1x16x128xbf16> to vector<16x128xbf16>
      %c0_8 = arith.constant 0 : index
      %c128 = arith.constant 128 : index
      %19 = vector.load %arg5[%c0_8, %c128] : memref<128x384xbf16, #tpu.memory_space<vmem>>, vector<128x256xbf16>
      %cst = arith.constant dense<0.000000e+00> : vector<16x256xf32>
      %20 = tpu.matmul %18, %19, %cst {dimension_numbers = #tpu.dot_dimension_numbers<[1], [0], [0], [1], [0, 0, 1, 1], [], []>} : vector<16x128xbf16>, vector<128x256xbf16>, vector<16x256xf32> -> vector<16x256xf32>
      %21 = arith.truncf %20 : vector<16x256xf32> to vector<16x256xbf16>
      %22 = vector.extract_strided_slice %21 {offsets = [0, 0], sizes = [16, 128], strides = [1, 1]} : vector<16x256xbf16> to vector<16x128xbf16>
      %23 = vector.extract_strided_slice %21 {offsets = [0, 128], sizes = [16, 128], strides = [1, 1]} : vector<16x256xbf16> to vector<16x128xbf16>
      %24 = arith.index_cast %arg2 : i32 to index
      %c0_9 = arith.constant 0 : index
      %c0_10 = arith.constant 0 : index
      %25 = vector.load %arg8[%24, %c0_9, %c0_10] : memref<1x16x128xbf16, #tpu.memory_space<vmem>>, vector<1x16x128xbf16>
      %26 = vector.shape_cast %25 : vector<1x16x128xbf16> to vector<16x128xbf16>
      %27 = vector.shape_cast %22 : vector<16x128xbf16> to vector<1x16x128xbf16>
      tpu.vector_store %arg8[%24, %c0_9, %c0_10], %27 {strides = array<i32>} : memref<1x16x128xbf16, #tpu.memory_space<vmem>>, vector<1x16x128xbf16>,
      %28 = arith.index_cast %arg2 : i32 to index
      %c0_11 = arith.constant 0 : index
      %c0_12 = arith.constant 0 : index
      %29 = vector.load %arg9[%28, %c0_11, %c0_12] : memref<1x16x128xbf16, #tpu.memory_space<vmem>>, vector<1x16x128xbf16>
      %30 = vector.shape_cast %29 : vector<1x16x128xbf16> to vector<16x128xbf16>
      %31 = vector.shape_cast %23 : vector<16x128xbf16> to vector<1x16x128xbf16>
      tpu.vector_store %arg9[%28, %c0_11, %c0_12], %31 {strides = array<i32>} : memref<1x16x128xbf16, #tpu.memory_space<vmem>>, vector<1x16x128xbf16>,
      %c0_13 = arith.constant 0 : index
      %c0_14 = arith.constant 0 : index
      %32 = vector.load %arg7[%c0_13, %c0_14] : memref<16x128xbf16, #tpu.memory_space<vmem>>, vector<16x128xbf16>
      %cst_15 = arith.constant dense<0.000000e+00> : vector<16x16xf32>
      %33 = tpu.matmul %32, %22, %cst_15 {dimension_numbers = #tpu.dot_dimension_numbers<[1], [1], [0], [0], [0, 0, 1, 0], [], []>} : vector<16x128xbf16>, vector<16x128xbf16>, vector<16x16xf32> -> vector<16x16xf32>
      %c16_i32 = arith.constant 16 : i32
      %34 = arith.muli %arg1, %c16_i32 : i32
      %35 = tpu.iota {dimensions = array<i32: 0>} : vector<16x16xi32>
      %36 = vector.broadcast %34 : i32 to vector<16x16xi32>
      %37 = arith.addi %36, %35 : vector<16x16xi32>
      %c16_i32_16 = arith.constant 16 : i32
      %38 = arith.muli %arg2, %c16_i32_16 : i32
      %39 = tpu.iota {dimensions = array<i32: 1>} : vector<16x16xi32>
      %40 = vector.broadcast %38 : i32 to vector<16x16xi32>
      %41 = arith.addi %40, %39 : vector<16x16xi32>
      %42 = arith.cmpi sle, %41, %37 : vector<16x16xi32>
      %cst_17 = arith.constant 0xFF800000 : f32
      %43 = vector.broadcast %cst_17 : f32 to vector<16x16xf32>
      %44 = arith.select %42, %33, %43 : vector<16x16xi1>, vector<16x16xf32>
      %c0_18 = arith.constant 0 : index
      %c0_19 = arith.constant 0 : index
      %45 = vector.load %arg10[%c0_18, %c0_19] : memref<16x1xf32, #tpu.memory_space<vmem>>, vector<16x1xf32>
      %cst_20 = arith.constant dense<0xFF800000> : vector<16xf32>
      %46 = vector.multi_reduction <maximumf>, %44, %cst_20 [1] : vector<16x16xf32> to vector<16xf32>
      %47 = vector.shape_cast %46 : vector<16xf32> to vector<16x1xf32>
      %48 = arith.maximumf %45, %47 : vector<16x1xf32>
      %49 = arith.subf %45, %48 : vector<16x1xf32>
      %50 = math.exp %49 : vector<16x1xf32>
      %51 = vector.broadcast %48 : vector<16x1xf32> to vector<16x16xf32>
      %52 = arith.subf %44, %51 : vector<16x16xf32>
      %53 = math.exp %52 : vector<16x16xf32>
      %c0_21 = arith.constant 0 : index
      %c0_22 = arith.constant 0 : index
      %54 = vector.load %arg11[%c0_21, %c0_22] : memref<16x1xf32, #tpu.memory_space<vmem>>, vector<16x1xf32>
      %55 = arith.mulf %50, %54 : vector<16x1xf32>
      %cst_23 = arith.constant dense<0.000000e+00> : vector<16xf32>
      %56 = vector.multi_reduction <add>, %53, %cst_23 [1] : vector<16x16xf32> to vector<16xf32>
      %57 = vector.shape_cast %56 : vector<16xf32> to vector<16x1xf32>
      %58 = arith.addf %55, %57 : vector<16x1xf32>
      %c0_24 = arith.constant 0 : index
      %c0_25 = arith.constant 0 : index
      %59 = vector.load %arg11[%c0_24, %c0_25] : memref<16x1xf32, #tpu.memory_space<vmem>>, vector<16x1xf32>
      tpu.vector_store %arg11[%c0_24, %c0_25], %58 {strides = array<i32>} : memref<16x1xf32, #tpu.memory_space<vmem>>, vector<16x1xf32>,
      %c0_26 = arith.constant 0 : index
      %c0_27 = arith.constant 0 : index
      %60 = vector.load %arg12[%c0_26, %c0_27] : memref<16x128xf32, #tpu.memory_space<vmem>>, vector<16x128xf32>
      %61 = vector.broadcast %50 : vector<16x1xf32> to vector<16x128xf32>
      %62 = arith.mulf %61, %60 : vector<16x128xf32>
      %63 = arith.truncf %53 : vector<16x16xf32> to vector<16x16xbf16>
      %cst_28 = arith.constant dense<0.000000e+00> : vector<16x128xf32>
      %64 = tpu.matmul %63, %23, %cst_28 {dimension_numbers = #tpu.dot_dimension_numbers<[1], [0], [0], [1], [0, 0, 1, 1], [], []>} : vector<16x16xbf16>, vector<16x128xbf16>, vector<16x128xf32> -> vector<16x128xf32>
      %65 = arith.addf %62, %64 : vector<16x128xf32>
      %c0_29 = arith.constant 0 : index
      %c0_30 = arith.constant 0 : index
      %66 = vector.load %arg12[%c0_29, %c0_30] : memref<16x128xf32, #tpu.memory_space<vmem>>, vector<16x128xf32>
      tpu.vector_store %arg12[%c0_29, %c0_30], %65 {strides = array<i32>} : memref<16x128xf32, #tpu.memory_space<vmem>>, vector<16x128xf32>,
      %c0_31 = arith.constant 0 : index
      %c0_32 = arith.constant 0 : index
      %67 = vector.load %arg10[%c0_31, %c0_32] : memref<16x1xf32, #tpu.memory_space<vmem>>, vector<16x1xf32>
      tpu.vector_store %arg10[%c0_31, %c0_32], %48 {strides = array<i32>} : memref<16x1xf32, #tpu.memory_space<vmem>>, vector<16x1xf32>,
    } else {
    }
    %c1_i32_4 = arith.constant 1 : i32
    %13 = arith.subi %1, %c1_i32_4 : i32
    %14 = arith.cmpi eq, %arg2, %13 : i32
    %15 = arith.extui %14 : i1 to i32
    %c0_i32_5 = arith.constant 0 : i32
    %16 = arith.cmpi ne, %15, %c0_i32_5 : i32
    scf.if %16 {
      %c0 = arith.constant 0 : index
      %c0_6 = arith.constant 0 : index
      %17 = vector.load %arg11[%c0, %c0_6] : memref<16x1xf32, #tpu.memory_space<vmem>>, vector<16x1xf32>
      %18 = tpu.reciprocal %17 {approx = true} : vector<16x1xf32> -> vector<16x1xf32>
      %c0_7 = arith.constant 0 : index
      %c0_8 = arith.constant 0 : index
      %19 = vector.load %arg12[%c0_7, %c0_8] : memref<16x128xf32, #tpu.memory_space<vmem>>, vector<16x128xf32>
      %20 = vector.broadcast %18 : vector<16x1xf32> to vector<16x128xf32>
      %21 = arith.mulf %19, %20 : vector<16x128xf32>
      %22 = arith.truncf %21 : vector<16x128xf32> to vector<16x128xbf16>
      %c0_9 = arith.constant 0 : index
      %c0_10 = arith.constant 0 : index
      %c0_11 = arith.constant 0 : index
      %23 = vector.load %arg6[%c0_9, %c0_10, %c0_11] : memref<1x16x128xbf16, #tpu.memory_space<vmem>>, vector<1x16x128xbf16>
      %24 = vector.shape_cast %23 : vector<1x16x128xbf16> to vector<16x128xbf16>
      %25 = vector.shape_cast %22 : vector<16x128xbf16> to vector<1x16x128xbf16>
      tpu.vector_store %arg6[%c0_9, %c0_10, %c0_11], %25 {strides = array<i32>} : memref<1x16x128xbf16, #tpu.memory_space<vmem>>, vector<1x16x128xbf16>,
    } else {
    }
    return
  }
  func.func @transform_0(%arg0: i32, %arg1: i32, %arg2: i32) -> (i32, i32, i32) {
    %c0_i32 = arith.constant 0 : i32
    %c0_i32_0 = arith.constant 0 : i32
    return %arg0, %arg1, %c0_i32 : i32, i32, i32
  }
  func.func @transform_1(%arg0: i32, %arg1: i32, %arg2: i32) -> (i32, i32, i32) {
    %c1_i32 = arith.constant 1 : i32
    %0 = arith.muli %arg1, %c1_i32 : i32
    %c1_i32_0 = arith.constant 1 : i32
    %1 = arith.addi %0, %c1_i32_0 : i32
    %c1_i32_1 = arith.constant 1 : i32
    %2 = arith.subi %1, %c1_i32_1 : i32
    %3 = arith.minsi %arg2, %2 : i32
    %4 = arith.maxsi %3, %0 : i32
    %c0_i32 = arith.constant 0 : i32
    %c0_i32_2 = arith.constant 0 : i32
    return %arg0, %4, %c0_i32 : i32, i32, i32
  }
  func.func @transform_2(%arg0: i32, %arg1: i32, %arg2: i32) -> (i32, i32) {
    %c0_i32 = arith.constant 0 : i32
    %c0_i32_0 = arith.constant 0 : i32
    %c0_i32_1 = arith.constant 0 : i32
    return %c0_i32, %c0_i32_0 : i32, i32
  }
  func.func @transform_3(%arg0: i32, %arg1: i32, %arg2: i32) -> (i32, i32, i32) {
    %c0_i32 = arith.constant 0 : i32
    %c0_i32_0 = arith.constant 0 : i32
    return %arg0, %arg1, %c0_i32 : i32, i32, i32
  }
}

</mosaic_0001>

<llo_original>
// kernel: tpu_custom_call.1
$region0: #{tpu_custom_call.1}
  #allocation0 [shape = 'u32[]', space=smem, size = 0x4, offset = 0x4, fixed_abs, tag = 'smem constant byte address 0x4 - core index']
  #allocation1 [shape = 'u32[144,128]{1,0:T(1,128)}', space=vmem, size = 0x12000, scoped, tag = 'internal scratch']
  #allocation2 [shape = 'bf16[16,128]{1,0:T(8,128)(2,1)}', space=vmem, size = 0x1000, scoped, tag = 'scratch operand']
  #allocation3 [shape = 'bf16[1,16,128]{2,1,0:T(8,128)(2,1)}', space=vmem, size = 0x1000, scoped, tag = 'scratch operand']
  #allocation4 [shape = 'bf16[1,16,128]{2,1,0:T(8,128)(2,1)}', space=vmem, size = 0x1000, scoped, tag = 'scratch operand']
  #allocation5 [shape = 'f32[16,1]{1,0:T(8,128)}', space=vmem, size = 0x2000, scoped, tag = 'scratch operand']
  #allocation6 [shape = 'f32[16,1]{1,0:T(8,128)}', space=vmem, size = 0x2000, scoped, tag = 'scratch operand']
  #allocation7 [shape = 'f32[16,128]{1,0:T(8,128)}', space=vmem, size = 0x2000, scoped, tag = 'scratch operand']
  %s0 = inlined_call_operand.hbm [shape: bf16[2,16,128], index: 0, kind: input, shape index: {}]
  %s1 = inlined_call_operand.hbm [shape: bf16[2,16,128], index: 1, kind: input, shape index: {}]
  %s2 = inlined_call_operand.hbm [shape: bf16[128,384], index: 2, kind: input, shape index: {}]
  %s3 = inlined_call_operand.hbm [shape: bf16[2,16,128], index: 3, kind: output, shape index: {}]
  %s4 = sld [smem:[#allocation0]]
  $region73: #{tpu_custom_call.1} parent=0
    _
  %s6 = ssub.s32 1, %s4
  %s7 = scalar_select 0, %s6, %s4
  $region1: #{tpu_custom_call.1} parent=0
    #allocation8 [shape = 'u8[8192]{0}', space=vmem, size = 0x2000, scoped, tag = 'input window, operand 0']
    #allocation9 [shape = 's32[2]{0}', space=sflag, size = 0x8, scoped, tag = 'scoped memory for tpu_custom_call.1']
    #allocation10 [shape = 's32[2]{0}', space=sflag, size = 0x8, scoped, tag = 'scoped memory for tpu_custom_call.1']
    #allocation11 [shape = 'u8[8192]{0}', space=vmem, size = 0x2000, scoped, tag = 'input window, operand 1']
    #allocation12 [shape = 's32[2]{0}', space=sflag, size = 0x8, scoped, tag = 'scoped memory for tpu_custom_call.1']
    #allocation13 [shape = 'u8[98304]{0}', space=vmem, size = 0x18000, scoped, tag = 'input window, operand 2, single buffered']
    #allocation14 [shape = 'u8[8192]{0}', space=vmem, size = 0x2000, scoped, tag = 'output window, operand 0']
    %8 = vsyncpa [#allocation9], 0
    %s9 = scalar_lea.sflag [#allocation9], 1
    %10 = vsyncpa %s9, 0
    %11 = vsyncpa [#allocation12], 0
    %s12 = scalar_lea.sflag [#allocation12], 1
    %13 = vsyncpa %s12, 0
    %14 = vsyncpa [#allocation10], 0
    %s15 = scalar_lea.sflag [#allocation10], 1
    %16 = vsyncpa %s15, 0
    loop: start=0, step=1, limit=4
    $region2: #{tpu_custom_call.1} parent=1 // loop_pre_header
      _
    $region3: #{tpu_custom_call.1} parent=1 // loop_header
      %s18 = sphi 0, %s22
      %p19 = scmp.ge.s32.totalorder %s18, 4
      %s25 = sphi 0, %s44
      %s26 = sphi 0, %s40
      %s27 = sphi 0, %s36
      %s28 = sphi 0, %s25
      %s29 = sphi 0, %s26
      %s30 = sphi 0, %s27
      %s31 = sphi 0, %s28
      %s32 = sphi 0, %s29
      %s33 = sphi 0, %s30
      %s49 = sphi 0, %s51
      %s52 = sphi 0, %s49
      %s53 = sphi 0, %s52
      %s69 = sphi 0, %s53
      %s85 = sphi 0, %s87
      %s88 = sphi 0, %s85
      %s89 = sphi 0, %s88
      %s105 = sphi 0, %s89
      %s109 = sphi 0, %s109
      %s111 = sphi 0, %s109
      %s112 = sphi 0, %s111
      %s126 = sphi 0, %s112
      %s134 = sphi 0, %s136
      %s137 = sphi 0, %s134
      %s138 = sphi 0, %s137
      %s154 = sphi 0, %s138
    $region4: #{tpu_custom_call.1} parent=1 // loop_header_branch
      %21 = sbr.rel (%p19) target = $region8
    $region5: #{tpu_custom_call.1} parent=1 // loop_body
      %s23 = ssub.s32 %s18, 1
      %s24 = ssub.s32 %s18, 2
      %s34 = sadd.s32 1, %s27
      %p35 = scmp.ge.s32.totalorder %s34, 1
      %s36 = scalar_select %p35, 0, %s34
      %s37 = sadd.s32 1, %s26
      %s38 = scalar_select %p35, %s37, %s26
      %p39 = scmp.ge.s32.totalorder %s38, 1
      %s40 = scalar_select %p39, 0, %s38
      %s41 = sadd.s32 1, %s25
      %s42 = scalar_select %p39, %s41, %s25
      %p43 = scmp.ge.s32.totalorder %s42, 2
      %s44 = scalar_select %p43, 0, %s42
      %s45 = ssub.s32 %s25, %s44
      %s46 = ssub.s32 %s26, %s40
      %s47 = sor.u32 %s45, %s46
      %p48 = scmp.eq.s32.totalorder %s47, 0
      %s50 = sadd.s32 %s49, 1
      %s51 = scalar_select %p48, %s49, %s50
      %p54 = pneg %p48
      %p55 = scmp.eq.s32.totalorder %s18, 1
      %p56 = por %p54, %p55
      %p57 = scmp.ne.s32.totalorder %s49, %s52
      %p58 = scmp.eq.s32.totalorder %s18, 0
      %p59 = por %p57, %p58
      %p60 = scmp.ne.s32.totalorder %s49, %s52
      %p61 = scmp.eq.s32.totalorder %s23, 1
      %p62 = por %p60, %p61
      %p63 = scmp.ne.s32.totalorder %s52, %s53
      %p64 = scmp.eq.s32.totalorder %s23, 0
      %p65 = por %p63, %p64
      %p66 = scmp.ne.s32.totalorder %s52, %s53
      %p67 = scmp.eq.s32.totalorder %s24, 1
      %p68 = por %p66, %p67
      %p70 = scmp.ne.s32.totalorder %s53, %s69
      %p71 = scmp.eq.s32.totalorder %s24, 0
      %p72 = por %p70, %p71
      %p73 = scmp.lt.s32.totalorder %s27, %s26
      %s74 = scalar_select %p73, %s27, %s26
      %p75 = scmp.gt.s32.totalorder %s74, %s26
      %s76 = scalar_select %p75, %s74, %s26
      %p77 = scmp.lt.s32.totalorder %s36, %s40
      %s78 = scalar_select %p77, %s36, %s40
      %p79 = scmp.gt.s32.totalorder %s78, %s40
      %s80 = scalar_select %p79, %s78, %s40
      %s81 = ssub.s32 %s25, %s44
      %s82 = ssub.s32 %s76, %s80
      %s83 = sor.u32 %s81, %s82
      %p84 = scmp.eq.s32.totalorder %s83, 0
      %s86 = sadd.s32 %s85, 1
      %s87 = scalar_select %p84, %s85, %s86
      %p90 = pneg %p84
      %p91 = scmp.eq.s32.totalorder %s18, 1
      %p92 = por %p90, %p91
      %p93 = scmp.ne.s32.totalorder %s85, %s88
      %p94 = scmp.eq.s32.totalorder %s18, 0
      %p95 = por %p93, %p94
      %p96 = scmp.ne.s32.totalorder %s85, %s88
      %p97 = scmp.eq.s32.totalorder %s23, 1
      %p98 = por %p96, %p97
      %p99 = scmp.ne.s32.totalorder %s88, %s89
      %p100 = scmp.eq.s32.totalorder %s23, 0
      %p101 = por %p99, %p100
      %p102 = scmp.ne.s32.totalorder %s88, %s89
      %p103 = scmp.eq.s32.totalorder %s24, 1
      %p104 = por %p102, %p103
      %p106 = scmp.ne.s32.totalorder %s89, %s105
      %p107 = scmp.eq.s32.totalorder %s24, 0
      %p108 = por %p106, %p107
      %s110 = sadd.s32 %s109, 1
      %p113 = scmp.eq.s32.totalorder %s18, 1
      %p114 = scmp.ne.s32.totalorder %s109, %s111
      %p115 = scmp.eq.s32.totalorder %s18, 0
      %p116 = por %p114, %p115
      %p117 = scmp.ne.s32.totalorder %s109, %s111
      %p118 = scmp.eq.s32.totalorder %s23, 1
      %p119 = por %p117, %p118
      %p120 = scmp.ne.s32.totalorder %s111, %s112
      %p121 = scmp.eq.s32.totalorder %s23, 0
      %p122 = por %p120, %p121
      %p123 = scmp.ne.s32.totalorder %s111, %s112
      %p124 = scmp.eq.s32.totalorder %s24, 1
      %p125 = por %p123, %p124
      %p127 = scmp.ne.s32.totalorder %s112, %s126
      %p128 = scmp.eq.s32.totalorder %s24, 0
      %p129 = por %p127, %p128
      %s130 = ssub.s32 %s25, %s44
      %s131 = ssub.s32 %s26, %s40
      %s132 = sor.u32 %s130, %s131
      %p133 = scmp.eq.s32.totalorder %s132, 0
      %s135 = sadd.s32 %s134, 1
      %s136 = scalar_select %p133, %s134, %s135
      %p139 = pneg %p133
      %p140 = scmp.eq.s32.totalorder %s18, 1
      %p141 = por %p139, %p140
      %p142 = scmp.ne.s32.totalorder %s134, %s137
      %p143 = scmp.eq.s32.totalorder %s18, 0
      %p144 = por %p142, %p143
      %p145 = scmp.ne.s32.totalorder %s134, %s137
      %p146 = scmp.eq.s32.totalorder %s23, 1
      %p147 = por %p145, %p146
      %p148 = scmp.ne.s32.totalorder %s137, %s138
      %p149 = scmp.eq.s32.totalorder %s23, 0
      %p150 = por %p148, %p149
      %p151 = scmp.ne.s32.totalorder %s137, %s138
      %p152 = scmp.eq.s32.totalorder %s24, 1
      %p153 = por %p151, %p152
      %p155 = scmp.ne.s32.totalorder %s138, %s154
      %p156 = scmp.eq.s32.totalorder %s24, 0
      %p157 = por %p155, %p156
      %p158 = scmp.le.s32.totalorder 1, %s18
      %p159 = scmp.lt.s32.totalorder %s18, 3
      %p160 = pnand %p158, %p159
      %p161 = pneg %p160
      // Predicated region
      $region9: #{tpu_custom_call.1} parent=5 // pred_check
        _
      $region10: #{tpu_custom_call.1} parent=5 // pred_check_branch
        %163 = sbr.rel (%p160) target = $region12
      $region11: #{tpu_custom_call.1} parent=5 // pred_region
        %s164 = ssub.s32 %s18, 1
        // Predicated region
        $region13: #{tpu_custom_call.1} parent=11 // pred_check
          %p165 = pneg %p122
        $region14: #{tpu_custom_call.1} parent=11 // pred_check_branch
          %167 = sbr.rel (%p165) target = $region16
        $region15: #{tpu_custom_call.1} parent=11 // pred_region
          %s169 = ssub.s32 3072, 3072
          %170 = vsyncadd [#allocation12], %s169
          %s171 = sshll.u32 [#allocation13], 4
          %s172 = int_to_ptr.vmem [resolvable:$true] %s171
          %177 = dma.hbm_to_vmem [thread:$0]  %s2, 3072, %s172, [#allocation12], 192, 192, 12
        $region16: #{tpu_custom_call.1} parent=11 // pred_fallthru
          _
      $region12: #{tpu_custom_call.1} parent=5 // pred_fallthru
        _
      %p178 = scmp.lt.s32.totalorder %s18, 2
      // Predicated region
      $region17: #{tpu_custom_call.1} parent=5 // pred_check
        %p179 = pneg %p178
      $region18: #{tpu_custom_call.1} parent=5 // pred_check_branch
        %181 = sbr.rel (%p179) target = $region20
      $region19: #{tpu_custom_call.1} parent=5 // pred_region
        // Predicated region
        $region21: #{tpu_custom_call.1} parent=19 // pred_check
          %p182 = pneg %p59
        $region22: #{tpu_custom_call.1} parent=19 // pred_check_branch
          %184 = sbr.rel (%p182) target = $region24
        $region23: #{tpu_custom_call.1} parent=19 // pred_region
          %s185 = sand.u32 %s49, 1
          %s186 = scalar_lea.sflag [#allocation9], %s185
          %s187 = sand.u32 %s49, 1
          %s188 = smul.addr %s187, 8
          %s189 = scalar_lea.vmem [#allocation8], %s188
          %s190 = smul.u32 2, %s26
          %s192 = ssub.s32 128, 128
          %193 = vsyncadd %s186, %s192
          %s194 = smul.addr %s25, 2
          %s195 = sadd.s32 %s190, %s194
          %s196 = smul.addr %s195, 64
          %s197 = scalar_lea.hbm %s0, %s196
          %s198 = sshll.u32 %s189, 4
          %s199 = int_to_ptr.vmem [resolvable:$true] %s198
          %204 = dma.hbm_to_vmem [thread:$0]  %s197, 128, %s199, %s186, 64, 64, 4
        $region24: #{tpu_custom_call.1} parent=19 // pred_fallthru
          _
        // Predicated region
        $region25: #{tpu_custom_call.1} parent=19 // pred_check
          %p205 = pneg %p95
        $region26: #{tpu_custom_call.1} parent=19 // pred_check_branch
          %207 = sbr.rel (%p205) target = $region28
        $region27: #{tpu_custom_call.1} parent=19 // pred_region
          %s208 = sand.u32 %s18, 1
          %s209 = scalar_lea.sflag [#allocation12], %s208
          %s210 = sand.u32 %s85, 1
          %s211 = smul.addr %s210, 8
          %s212 = scalar_lea.vmem [#allocation11], %s211
          %p213 = scmp.lt.s32.totalorder %s27, %s26
          %s214 = scalar_select %p213, %s27, %s26
          %p215 = scmp.gt.s32.totalorder %s214, %s26
          %s216 = scalar_select %p215, %s214, %s26
          %s217 = smul.u32 2, %s216
          %s219 = ssub.s32 128, 128
          %220 = vsyncadd %s209, %s219
          %s221 = smul.addr %s25, 2
          %s222 = sadd.s32 %s217, %s221
          %s223 = smul.addr %s222, 64
          %s224 = scalar_lea.hbm %s1, %s223
          %s225 = sshll.u32 %s212, 4
          %s226 = int_to_ptr.vmem [resolvable:$true] %s225
          %231 = dma.hbm_to_vmem [thread:$0]  %s224, 128, %s226, %s209, 64, 64, 4
        $region28: #{tpu_custom_call.1} parent=19 // pred_fallthru
          _
      $region20: #{tpu_custom_call.1} parent=5 // pred_fallthru
        _
      %p232 = scmp.le.s32.totalorder 1, %s18
      %p233 = scmp.lt.s32.totalorder %s18, 3
      %p234 = pnand %p232, %p233
      %p235 = pneg %p234
      // Predicated region
      $region29: #{tpu_custom_call.1} parent=5 // pred_check
        _
      $region30: #{tpu_custom_call.1} parent=5 // pred_check_branch
        %237 = sbr.rel (%p234) target = $region32
      $region31: #{tpu_custom_call.1} parent=5 // pred_region
        %s238 = ssub.s32 %s18, 1
        %s239 = sand.u32 %s52, 1
        %s240 = scalar_lea.sflag [#allocation9], %s239
        %s241 = sand.u32 %s52, 1
        %s242 = smul.addr %s241, 8
        %s243 = scalar_lea.vmem [#allocation8], %s242
        // Predicated region
        $region33: #{tpu_custom_call.1} parent=31 // pred_check
          %p244 = pneg %p65
        $region34: #{tpu_custom_call.1} parent=31 // pred_check_branch
          %246 = sbr.rel (%p244) target = $region36
        $region35: #{tpu_custom_call.1} parent=31 // pred_region
          %247 = dma.done %s240, 128
        $region36: #{tpu_custom_call.1} parent=31 // pred_fallthru
          _
        %s248 = sand.u32 %s23, 1
        %s249 = scalar_lea.sflag [#allocation12], %s248
        %s250 = sand.u32 %s88, 1
        %s251 = smul.addr %s250, 8
        %s252 = scalar_lea.vmem [#allocation11], %s251
        // Predicated region
        $region37: #{tpu_custom_call.1} parent=31 // pred_check
          %p253 = pneg %p101
        $region38: #{tpu_custom_call.1} parent=31 // pred_check_branch
          %255 = sbr.rel (%p253) target = $region40
        $region39: #{tpu_custom_call.1} parent=31 // pred_region
          %256 = dma.done %s249, 128
        $region40: #{tpu_custom_call.1} parent=31 // pred_fallthru
          _
        // Predicated region
        $region41: #{tpu_custom_call.1} parent=31 // pred_check
          %p257 = pneg %p122
        $region42: #{tpu_custom_call.1} parent=31 // pred_check_branch
          %259 = sbr.rel (%p257) target = $region44
        $region43: #{tpu_custom_call.1} parent=31 // pred_region
          %260 = dma.done [#allocation12], 3072
        $region44: #{tpu_custom_call.1} parent=31 // pred_fallthru
          _
        %s261 = sand.u32 %s52, 1
        %s262 = scalar_lea.sflag [#allocation9], %s261
        %s263 = sand.u32 %s52, 1
        %s264 = smul.addr %s263, 8
        %s265 = scalar_lea.vmem [#allocation8], %s264
        %p266 = pneg %p65
        %p267 = pneg %p62
        %s268 = sand.u32 %s23, 1
        %s269 = scalar_lea.sflag [#allocation12], %s268
        %s270 = sand.u32 %s88, 1
        %s271 = smul.addr %s270, 8
        %s272 = scalar_lea.vmem [#allocation11], %s271
        %p273 = pneg %p101
        %p274 = pneg %p98
        %p275 = pneg %p122
        %p276 = pneg %p119
        %p277 = pneg %p150
        %p278 = pneg %p147
        %s279 = sand.u32 %s137, 1
        %s280 = scalar_lea.sflag [#allocation10], %s279
        %s281 = sand.u32 %s137, 1
        %s282 = smul.addr %s281, 8
        %s283 = scalar_lea.vmem [#allocation14], %s282
        %s284 = smul.u32 2, %s29
        %p285 = scmp.lt.s32.totalorder %s30, %s29
        %s286 = scalar_select %p285, %s30, %s29
        %p287 = scmp.gt.s32.totalorder %s286, %s29
        %s288 = scalar_select %p287, %s286, %s29
        %s289 = smul.u32 2, %s288
        %s290 = smul.u32 2, %s29
        %s292 = sadd.s32 %s29, 1
        %p293 = scmp.eq.s32.totalorder %s30, 0
        // Predicated region
        $region45: #{tpu_custom_call.1} parent=31 // pred_check
          %p294 = pneg %p293
        $region46: #{tpu_custom_call.1} parent=31 // pred_check_branch
          %296 = sbr.rel (%p294) target = $region48
        $region47: #{tpu_custom_call.1} parent=31 // pred_region
          %v297 = vld [vmem:[%s243] sm:$0xf]
          %v298 = vld [vmem:[%s243 + $0x4] sm:$0xf]
          %v299 = vld [vmem:[#allocation13] sm:$0xf]
          %v300 = vld [vmem:[#allocation13 + $0xc] sm:$0xf]
          %v301 = vld [vmem:[#allocation13 + $0x18] sm:$0xf]
          %v302 = vld [vmem:[#allocation13 + $0x24] sm:$0xf]
          %v303 = vld [vmem:[#allocation13 + $0x30] sm:$0xf]
          %v304 = vld [vmem:[#allocation13 + $0x3c] sm:$0xf]
          %v305 = vld [vmem:[#allocation13 + $0x48] sm:$0xf]
          %v306 = vld [vmem:[#allocation13 + $0x54] sm:$0xf]
          %v307 = vld [vmem:[#allocation13 + $0x60] sm:$0xf]
          %v308 = vld [vmem:[#allocation13 + $0x6c] sm:$0xf]
          %v309 = vld [vmem:[#allocation13 + $0x78] sm:$0xf]
          %v310 = vld [vmem:[#allocation13 + $0x84] sm:$0xf]
          %v311 = vld [vmem:[#allocation13 + $0x90] sm:$0xf]
          %v312 = vld [vmem:[#allocation13 + $0x9c] sm:$0xf]
          %v313 = vld [vmem:[#allocation13 + $0xa8] sm:$0xf]
          %v314 = vld [vmem:[#allocation13 + $0xb4] sm:$0xf]
          %v317 = vunpack.c.l.b16 %v297
          %v318 = vunpack.c.l.b16 %v298
          %v319 = vpack.c.b16 %v318, %v317
          %v337 = vunpack.c.l.b16 %v299
          %v338 = vunpack.c.l.b16 %v300
          %v339 = vunpack.c.l.b16 %v301
          %v340 = vunpack.c.l.b16 %v302
          %v341 = vunpack.c.l.b16 %v303
          %v342 = vunpack.c.l.b16 %v304
          %v343 = vunpack.c.l.b16 %v305
          %v344 = vunpack.c.l.b16 %v306
          %v345 = vunpack.c.l.b16 %v307
          %v346 = vunpack.c.l.b16 %v308
          %v347 = vunpack.c.l.b16 %v309
          %v348 = vunpack.c.l.b16 %v310
          %v349 = vunpack.c.l.b16 %v311
          %v350 = vunpack.c.l.b16 %v312
          %v351 = vunpack.c.l.b16 %v313
          %v352 = vunpack.c.l.b16 %v314
          %v353 = vpack.c.b16 %v338, %v337
          %v354 = vpack.c.b16 %v340, %v339
          %v355 = vpack.c.b16 %v342, %v341
          %v356 = vpack.c.b16 %v344, %v343
          %v357 = vpack.c.b16 %v346, %v345
          %v358 = vpack.c.b16 %v348, %v347
          %v359 = vpack.c.b16 %v350, %v349
          %v360 = vpack.c.b16 %v352, %v351
          %369 = vmatprep.subr.bf16.mxu0 0
          %370 = vmatpush1.bf16.msra.mxu0 %v360
          %371 = vmatprep.subr.bf16.mxu0 0
          %372 = vmatpush1.bf16.msra.mxu0 %v359
          %373 = vmatprep.subr.bf16.mxu0 0
          %374 = vmatpush1.bf16.msra.mxu0 %v358
          %375 = vmatprep.subr.bf16.mxu0 0
          %376 = vmatpush1.bf16.msra.mxu0 %v357
          %377 = vmatprep.subr.bf16.mxu0 0
          %378 = vmatpush1.bf16.msra.mxu0 %v356
          %379 = vmatprep.subr.bf16.mxu0 0
          %380 = vmatpush1.bf16.msra.mxu0 %v355
          %381 = vmatprep.subr.bf16.mxu0 0
          %382 = vmatpush1.bf16.msra.mxu0 %v354
          %383 = vmatprep.subr.bf16.mxu0 0
          %384 = vmatpush1.bf16.msra.mxu0 %v353
          %385 = vmatprep.subr.bf16.mxu0 0
          %386 = vmatpush2.bf16.msra.mxu0 0
          %387 = vmatprep.subr.bf16.mxu0 0
          %388 = vmatpush2.bf16.msra.mxu0 0
          %389 = vmatprep.subr.bf16.mxu0 0
          %390 = vmatpush2.bf16.msra.mxu0 0
          %391 = vmatprep.subr.bf16.mxu0 0
          %392 = vmatpush2.bf16.msra.mxu0 0
          %393 = vmatprep.subr.bf16.mxu0 0
          %394 = vmatpush2.bf16.msra.mxu0 0
          %395 = vmatprep.subr.bf16.mxu0 0
          %396 = vmatpush2.bf16.msra.mxu0 0
          %397 = vmatprep.subr.bf16.mxu0 0
          %398 = vmatpush2.bf16.msra.mxu0 0
          %399 = vmatprep.subr.bf16.mxu0 0
          %400 = vmatpush2.bf16.msra.mxu0 0
          %401 = vmatprep.mubr.bf16.mxu0 0
          %402 = vmatmul.mubr.bf16.gmra.mxu0 %v319
          %v403 = vpop.f32.mrf.mxu0
          %v404 = vadd.f32 0.0, %v403
          %v405 = vpop.f32.mrf.mxu0
          %v406 = vpop.f32.mrf.mxu0
          %v407 = vadd.f32 0.0, %v406
          %v408 = vpop.f32.mrf.mxu0
          %409 = vdwg.mxu0
          %v410 = vpack.c.bf16 %v407, %v404
          %v412 = vunpack.c.l.b16 %v410
          %v413 = vunpack.c.h.b16 %v410
          %v414 = vpack.c.b16 %v412, %v412
          %v415 = vpack.c.b16 %v413, %v413
          %418 = vst [vmem:[#allocation2] sm:$0xf] %v414
          %419 = vst [vmem:[#allocation2 + $0x4] sm:$0xf] %v415
          %vm420 = vcmask 7168
          %421 = vst.msk [vmem:[#allocation5] sm:$0xff] %vm420, -inf
          %422 = vst.msk [vmem:[#allocation5 + $0x8] sm:$0xff] %vm420, -inf
          %423 = vst.msk [vmem:[#allocation6] sm:$0xff] %vm420, 0.0
          %424 = vst.msk [vmem:[#allocation6 + $0x8] sm:$0xff] %vm420, 0.0
          %425 = vst [vmem:[#allocation7] sm:$0xff] 0.0
          %426 = vst [vmem:[#allocation7 + $0x8] sm:$0xff] 0.0
        $region48: #{tpu_custom_call.1} parent=31 // pred_fallthru
          _
        %p427 = scmp.lt.s32.totalorder %s30, %s29
        // Predicated region
        $region49: #{tpu_custom_call.1} parent=31 // pred_check
          %p428 = pneg %p427
        $region50: #{tpu_custom_call.1} parent=31 // pred_check_branch
          %430 = sbr.rel (%p428) target = $region52
        $region51: #{tpu_custom_call.1} parent=31 // pred_region
          %s431 = smul.u32 %s30, 2
          %s432 = smul.addr %s431, 4
          %s433 = scalar_lea.vmem [#allocation3], %s432
          %v434 = vld [vmem:[%s433] sm:$0xf]
          %v435 = vld [vmem:[%s433 + $0x4] sm:$0xf]
          %s436 = smul.addr %s431, 4
          %s437 = scalar_lea.vmem [#allocation4], %s436
          %v438 = vld [vmem:[%s437] sm:$0xf]
          %v439 = vld [vmem:[%s437 + $0x4] sm:$0xf]
          %v440 = vld [vmem:[#allocation2] sm:$0xf]
          %v441 = vld [vmem:[#allocation2 + $0x4] sm:$0xf]
          %v444 = vunpack.c.l.b16 %v440
          %v445 = vunpack.c.l.b16 %v441
          %v446 = vpack.c.b16 %v445, %v444
          %v450 = vunpack.c.l.b16 %v434
          %v451 = vunpack.c.l.b16 %v435
          %v452 = vpack.c.b16 %v451, %v450
          %454 = vmatprep.subr.bf16.mxu0 0
          %455 = vmatpush1.bf16.xpose.msra.mxu0 0
          %456 = vmatprep.subr.bf16.mxu0 0
          %457 = vmatpush1.bf16.xpose.msra.mxu0 0
          %458 = vmatprep.subr.bf16.mxu0 0
          %459 = vmatpush1.bf16.xpose.msra.mxu0 0
          %460 = vmatprep.subr.bf16.mxu0 0
          %461 = vmatpush1.bf16.xpose.msra.mxu0 0
          %462 = vmatprep.subr.bf16.mxu0 0
          %463 = vmatpush1.bf16.xpose.msra.mxu0 0
          %464 = vmatprep.subr.bf16.mxu0 0
          %465 = vmatpush1.bf16.xpose.msra.mxu0 0
          %466 = vmatprep.subr.bf16.mxu0 0
          %467 = vmatpush1.bf16.xpose.msra.mxu0 0
          %468 = vmatprep.subr.bf16.mxu0 0
          %469 = vmatpush1.bf16.xpose.msra.mxu0 %v452
          %470 = vmatprep.subr.bf16.mxu0 0
          %471 = vmatpush2.bf16.xpose.msra.mxu0 0
          %472 = vmatprep.subr.bf16.mxu0 0
          %473 = vmatpush2.bf16.xpose.msra.mxu0 0
          %474 = vmatprep.subr.bf16.mxu0 0
          %475 = vmatpush2.bf16.xpose.msra.mxu0 0
          %476 = vmatprep.subr.bf16.mxu0 0
          %477 = vmatpush2.bf16.xpose.msra.mxu0 0
          %478 = vmatprep.subr.bf16.mxu0 0
          %479 = vmatpush2.bf16.xpose.msra.mxu0 0
          %480 = vmatprep.subr.bf16.mxu0 0
          %481 = vmatpush2.bf16.xpose.msra.mxu0 0
          %482 = vmatprep.subr.bf16.mxu0 0
          %483 = vmatpush2.bf16.xpose.msra.mxu0 0
          %484 = vmatprep.subr.bf16.mxu0 0
          %485 = vmatpush2.bf16.xpose.msra.mxu0 0
          %486 = vmatprep.mubr.bf16.mxu0 0
          %487 = vmatmul.mubr.bf16.gmra.mxu0 %v446
          %v488 = vpop.f32.mrf.mxu0
          %v489 = vadd.f32 0.0, %v488
          %v490 = vpop.f32.mrf.mxu0
          %v491 = vpop.f32.mrf.mxu0
          %v492 = vadd.f32 0.0, %v491
          %v493 = vpop.f32.mrf.mxu0
          %494 = vdwg.mxu0
          %v495 = vld [vmem:[#allocation5] sm:$0xff]
          %v496 = vld [vmem:[#allocation5 + $0x8] sm:$0xff]
          %vm497 = vcmask 130048
          %v498 = vsel %vm497, %v489, -inf
          %499 = vmax.xlane.f32.xlu0 %v498
          %v500 = vpop.xlane.xlu0 %499
          %v501 = vsel %vm497, %v492, -inf
          %502 = vmax.xlane.f32.xlu0 %v501
          %v503 = vpop.xlane.xlu0 %502
          %v504 = vmax.f32 %v495, %v500
          %v505 = vmax.f32 %v496, %v503
          %v506 = vsub.f32 %v495, %v504
          %v507 = vsub.f32 %v496, %v505
          %v508 = vmul.f32 %v506, 1.442695
          %v509 = vpow.pop %v508
          %v510 = vmul.f32 %v507, 1.442695
          %v511 = vpow.pop %v510
          %513 = vset.pattern.permute.xlu0 0
          %514 = vperm.xlu0 %513, %v504
          %v515 = vpop.permute.xlu0 %514
          %518 = vset.pattern.permute.xlu0 0
          %519 = vperm.xlu0 %518, %v505
          %v520 = vpop.permute.xlu0 %519
          %v522 = vsub.f32 %v489, %v515
          %v523 = vsub.f32 %v492, %v520
          %v524 = vmul.f32 %v522, 1.442695
          %v525 = vpow.pop %v524
          %v526 = vmul.f32 %v523, 1.442695
          %v527 = vpow.pop %v526
          %v528 = vld [vmem:[#allocation6] sm:$0xff]
          %v529 = vld [vmem:[#allocation6 + $0x8] sm:$0xff]
          %v530 = vmul.f32 %v509, %v528
          %v531 = vmul.f32 %v511, %v529
          %v532 = vsel %vm497, %v525, 0.0
          %533 = vadd.xlane.f32.xlu0 %v532
          %v534 = vpop.xlane.xlu0 %533
          %v535 = vsel %vm497, %v527, 0.0
          %536 = vadd.xlane.f32.xlu0 %v535
          %v537 = vpop.xlane.xlu0 %536
          %v538 = vadd.f32 %v530, %v534
          %v539 = vadd.f32 %v531, %v537
          %vm540 = vcmask 7168
          %541 = vst.msk [vmem:[#allocation6] sm:$0xff] %vm540, %v538
          %542 = vst.msk [vmem:[#allocation6 + $0x8] sm:$0xff] %vm540, %v539
          %v543 = vld [vmem:[#allocation7] sm:$0xff]
          %v544 = vld [vmem:[#allocation7 + $0x8] sm:$0xff]
          %546 = vset.pattern.permute.xlu0 0
          %547 = vperm.xlu0 %546, %v509
          %v548 = vpop.permute.xlu0 %547
          %551 = vset.pattern.permute.xlu0 0
          %552 = vperm.xlu0 %551, %v511
          %v553 = vpop.permute.xlu0 %552
          %v555 = vmul.f32 %v548, %v543
          %v556 = vmul.f32 %v553, %v544
          %v557 = vpack.c.bf16 %v527, %v525
          %v560 = vunpack.c.l.b16 %v438
          %v561 = vunpack.c.l.b16 %v439
          %v562 = vpack.c.b16 %v561, %v560
          %v565 = vsel %vm497, %v557, 0
          %567 = vmatprep.subr.bf16.mxu0 0
          %568 = vmatpush1.bf16.msra.mxu0 0
          %569 = vmatprep.subr.bf16.mxu0 0
          %570 = vmatpush1.bf16.msra.mxu0 0
          %571 = vmatprep.subr.bf16.mxu0 0
          %572 = vmatpush1.bf16.msra.mxu0 0
          %573 = vmatprep.subr.bf16.mxu0 0
          %574 = vmatpush1.bf16.msra.mxu0 0
          %575 = vmatprep.subr.bf16.mxu0 0
          %576 = vmatpush1.bf16.msra.mxu0 0
          %577 = vmatprep.subr.bf16.mxu0 0
          %578 = vmatpush1.bf16.msra.mxu0 0
          %579 = vmatprep.subr.bf16.mxu0 0
          %580 = vmatpush1.bf16.msra.mxu0 0
          %581 = vmatprep.subr.bf16.mxu0 0
          %582 = vmatpush1.bf16.msra.mxu0 %v562
          %583 = vmatprep.subr.bf16.mxu0 0
          %584 = vmatpush2.bf16.msra.mxu0 0
          %585 = vmatprep.subr.bf16.mxu0 0
          %586 = vmatpush2.bf16.msra.mxu0 0
          %587 = vmatprep.subr.bf16.mxu0 0
          %588 = vmatpush2.bf16.msra.mxu0 0
          %589 = vmatprep.subr.bf16.mxu0 0
          %590 = vmatpush2.bf16.msra.mxu0 0
          %591 = vmatprep.subr.bf16.mxu0 0
          %592 = vmatpush2.bf16.msra.mxu0 0
          %593 = vmatprep.subr.bf16.mxu0 0
          %594 = vmatpush2.bf16.msra.mxu0 0
          %595 = vmatprep.subr.bf16.mxu0 0
          %596 = vmatpush2.bf16.msra.mxu0 0
          %597 = vmatprep.subr.bf16.mxu0 0
          %598 = vmatpush2.bf16.msra.mxu0 0
          %599 = vmatprep.mubr.bf16.mxu0 0
          %600 = vmatmul.mubr.bf16.gmra.mxu0 %v565
          %v601 = vpop.f32.mrf.mxu0
          %v602 = vadd.f32 0.0, %v601
          %v603 = vpop.f32.mrf.mxu0
          %v604 = vpop.f32.mrf.mxu0
          %v605 = vadd.f32 0.0, %v604
          %v606 = vpop.f32.mrf.mxu0
          %607 = vdwg.mxu0
          %v608 = vadd.f32 %v555, %v602
          %v609 = vadd.f32 %v556, %v605
          %610 = vst [vmem:[#allocation7] sm:$0xff] %v608
          %611 = vst [vmem:[#allocation7 + $0x8] sm:$0xff] %v609
          %612 = vst.msk [vmem:[#allocation5] sm:$0xff] %vm540, %v504
          %613 = vst.msk [vmem:[#allocation5 + $0x8] sm:$0xff] %vm540, %v505
        $region52: #{tpu_custom_call.1} parent=31 // pred_fallthru
          _
        %p614 = scmp.ge.s32.totalorder %s30, %s29
        %p615 = scmp.lt.s32.totalorder %s30, %s292
        %p616 = pnand %p614, %p615
        %p617 = pneg %p616
        // Predicated region
        $region53: #{tpu_custom_call.1} parent=31 // pred_check
          _
        $region54: #{tpu_custom_call.1} parent=31 // pred_check_branch
          %619 = sbr.rel (%p616) target = $region56
        $region55: #{tpu_custom_call.1} parent=31 // pred_region
          %v620 = vld [vmem:[%s252] sm:$0xf]
          %v621 = vld [vmem:[%s252 + $0x4] sm:$0xf]
          %v622 = vld [vmem:[#allocation13 + $0x4] sm:$0xff]
          %v623 = vld [vmem:[#allocation13 + $0x10] sm:$0xff]
          %v624 = vld [vmem:[#allocation13 + $0x1c] sm:$0xff]
          %v625 = vld [vmem:[#allocation13 + $0x28] sm:$0xff]
          %v626 = vld [vmem:[#allocation13 + $0x34] sm:$0xff]
          %v627 = vld [vmem:[#allocation13 + $0x40] sm:$0xff]
          %v628 = vld [vmem:[#allocation13 + $0x4c] sm:$0xff]
          %v629 = vld [vmem:[#allocation13 + $0x58] sm:$0xff]
          %v630 = vld [vmem:[#allocation13 + $0x64] sm:$0xff]
          %v631 = vld [vmem:[#allocation13 + $0x70] sm:$0xff]
          %v632 = vld [vmem:[#allocation13 + $0x7c] sm:$0xff]
          %v633 = vld [vmem:[#allocation13 + $0x88] sm:$0xff]
          %v634 = vld [vmem:[#allocation13 + $0x94] sm:$0xff]
          %v635 = vld [vmem:[#allocation13 + $0xa0] sm:$0xff]
          %v636 = vld [vmem:[#allocation13 + $0xac] sm:$0xff]
          %v637 = vld [vmem:[#allocation13 + $0xb8] sm:$0xff]
          %v640 = vunpack.c.l.b16 %v620
          %v641 = vunpack.c.l.b16 %v621
          %v642 = vpack.c.b16 %v641, %v640
          %v660 = vunpack.c.l.b16 %v622
          %v661 = vunpack.c.h.b16 %v622
          %v662 = vunpack.c.l.b16 %v623
          %v663 = vunpack.c.h.b16 %v623
          %v664 = vunpack.c.l.b16 %v624
          %v665 = vunpack.c.h.b16 %v624
          %v666 = vunpack.c.l.b16 %v625
          %v667 = vunpack.c.h.b16 %v625
          %v668 = vunpack.c.l.b16 %v626
          %v669 = vunpack.c.h.b16 %v626
          %v670 = vunpack.c.l.b16 %v627
          %v671 = vunpack.c.h.b16 %v627
          %v672 = vunpack.c.l.b16 %v628
          %v673 = vunpack.c.h.b16 %v628
          %v674 = vunpack.c.l.b16 %v629
          %v675 = vunpack.c.h.b16 %v629
          %v676 = vunpack.c.l.b16 %v630
          %v677 = vunpack.c.h.b16 %v630
          %v678 = vunpack.c.l.b16 %v631
          %v679 = vunpack.c.h.b16 %v631
          %v680 = vunpack.c.l.b16 %v632
          %v681 = vunpack.c.h.b16 %v632
          %v682 = vunpack.c.l.b16 %v633
          %v683 = vunpack.c.h.b16 %v633
          %v684 = vunpack.c.l.b16 %v634
          %v685 = vunpack.c.h.b16 %v634
          %v686 = vunpack.c.l.b16 %v635
          %v687 = vunpack.c.h.b16 %v635
          %v688 = vunpack.c.l.b16 %v636
          %v689 = vunpack.c.h.b16 %v636
          %v690 = vunpack.c.l.b16 %v637
          %v691 = vunpack.c.h.b16 %v637
          %v692 = vpack.c.b16 %v662, %v660
          %v693 = vpack.c.b16 %v663, %v661
          %v694 = vpack.c.b16 %v666, %v664
          %v695 = vpack.c.b16 %v667, %v665
          %v696 = vpack.c.b16 %v670, %v668
          %v697 = vpack.c.b16 %v671, %v669
          %v698 = vpack.c.b16 %v674, %v672
          %v699 = vpack.c.b16 %v675, %v673
          %v700 = vpack.c.b16 %v678, %v676
          %v701 = vpack.c.b16 %v679, %v677
          %v702 = vpack.c.b16 %v682, %v680
          %v703 = vpack.c.b16 %v683, %v681
          %v704 = vpack.c.b16 %v686, %v684
          %v705 = vpack.c.b16 %v687, %v685
          %v706 = vpack.c.b16 %v690, %v688
          %v707 = vpack.c.b16 %v691, %v689
          %724 = vmatprep.subr.bf16.mxu0 %v707
          %725 = vmatpush1.bf16.msra.mxu0 %v706
          %726 = vmatprep.subr.bf16.mxu0 %v705
          %727 = vmatpush1.bf16.msra.mxu0 %v704
          %728 = vmatprep.subr.bf16.mxu0 %v703
          %729 = vmatpush1.bf16.msra.mxu0 %v702
          %730 = vmatprep.subr.bf16.mxu0 %v701
          %731 = vmatpush1.bf16.msra.mxu0 %v700
          %732 = vmatprep.subr.bf16.mxu0 %v699
          %733 = vmatpush1.bf16.msra.mxu0 %v698
          %734 = vmatprep.subr.bf16.mxu0 %v697
          %735 = vmatpush1.bf16.msra.mxu0 %v696
          %736 = vmatprep.subr.bf16.mxu0 %v695
          %737 = vmatpush1.bf16.msra.mxu0 %v694
          %738 = vmatprep.subr.bf16.mxu0 %v693
          %739 = vmatpush1.bf16.msra.mxu0 %v692
          %740 = vmatprep.subr.bf16.mxu0 0
          %741 = vmatpush2.bf16.msra.mxu0 0
          %742 = vmatprep.subr.bf16.mxu0 0
          %743 = vmatpush2.bf16.msra.mxu0 0
          %744 = vmatprep.subr.bf16.mxu0 0
          %745 = vmatpush2.bf16.msra.mxu0 0
          %746 = vmatprep.subr.bf16.mxu0 0
          %747 = vmatpush2.bf16.msra.mxu0 0
          %748 = vmatprep.subr.bf16.mxu0 0
          %749 = vmatpush2.bf16.msra.mxu0 0
          %750 = vmatprep.subr.bf16.mxu0 0
          %751 = vmatpush2.bf16.msra.mxu0 0
          %752 = vmatprep.subr.bf16.mxu0 0
          %753 = vmatpush2.bf16.msra.mxu0 0
          %754 = vmatprep.subr.bf16.mxu0 0
          %755 = vmatpush2.bf16.msra.mxu0 0
          %756 = vmatprep.mubr.bf16.mxu0 0
          %757 = vmatmul.mubr.bf16.gmra.mxu0 %v642
          %v758 = vpop.f32.mrf.mxu0
          %v759 = vadd.f32 0.0, %v758
          %v760 = vpop.f32.mrf.mxu0
          %v761 = vadd.f32 0.0, %v760
          %v762 = vpop.f32.mrf.mxu0
          %v763 = vadd.f32 0.0, %v762
          %v764 = vpop.f32.mrf.mxu0
          %v765 = vadd.f32 0.0, %v764
          %766 = vdwg.mxu0
          %v767 = vpack.c.bf16 %v763, %v759
          %v768 = vpack.c.bf16 %v765, %v761
          %v770 = vunpack.c.l.b16 %v767
          %v771 = vunpack.c.h.b16 %v767
          %v772 = vpack.c.b16 %v770, %v770
          %v773 = vpack.c.b16 %v771, %v771
          %s776 = smul.u32 %s30, 2
          %s777 = smul.addr %s776, 4
          %s778 = scalar_lea.vmem [#allocation3], %s777
          %779 = vst [vmem:[%s778] sm:$0xf] %v772
          %780 = vst [vmem:[%s778 + $0x4] sm:$0xf] %v773
          %v782 = vunpack.c.l.b16 %v768
          %v783 = vunpack.c.h.b16 %v768
          %v784 = vpack.c.b16 %v782, %v782
          %v785 = vpack.c.b16 %v783, %v783
          %s788 = smul.addr %s776, 4
          %s789 = scalar_lea.vmem [#allocation4], %s788
          %790 = vst [vmem:[%s789] sm:$0xf] %v784
          %791 = vst [vmem:[%s789 + $0x4] sm:$0xf] %v785
          %v792 = vld [vmem:[#allocation2] sm:$0xf]
          %v793 = vld [vmem:[#allocation2 + $0x4] sm:$0xf]
          %v796 = vunpack.c.l.b16 %v792
          %v797 = vunpack.c.l.b16 %v793
          %v798 = vpack.c.b16 %v797, %v796
          %800 = vmatprep.subr.bf16.mxu0 0
          %801 = vmatpush1.bf16.xpose.msra.mxu0 0
          %802 = vmatprep.subr.bf16.mxu0 0
          %803 = vmatpush1.bf16.xpose.msra.mxu0 0
          %804 = vmatprep.subr.bf16.mxu0 0
          %805 = vmatpush1.bf16.xpose.msra.mxu0 0
          %806 = vmatprep.subr.bf16.mxu0 0
          %807 = vmatpush1.bf16.xpose.msra.mxu0 0
          %808 = vmatprep.subr.bf16.mxu0 0
          %809 = vmatpush1.bf16.xpose.msra.mxu0 0
          %810 = vmatprep.subr.bf16.mxu0 0
          %811 = vmatpush1.bf16.xpose.msra.mxu0 0
          %812 = vmatprep.subr.bf16.mxu0 0
          %813 = vmatpush1.bf16.xpose.msra.mxu0 0
          %814 = vmatprep.subr.bf16.mxu0 0
          %815 = vmatpush1.bf16.xpose.msra.mxu0 %v767
          %816 = vmatprep.subr.bf16.mxu0 0
          %817 = vmatpush2.bf16.xpose.msra.mxu0 0
          %818 = vmatprep.subr.bf16.mxu0 0
          %819 = vmatpush2.bf16.xpose.msra.mxu0 0
          %820 = vmatprep.subr.bf16.mxu0 0
          %821 = vmatpush2.bf16.xpose.msra.mxu0 0
          %822 = vmatprep.subr.bf16.mxu0 0
          %823 = vmatpush2.bf16.xpose.msra.mxu0 0
          %824 = vmatprep.subr.bf16.mxu0 0
          %825 = vmatpush2.bf16.xpose.msra.mxu0 0
          %826 = vmatprep.subr.bf16.mxu0 0
          %827 = vmatpush2.bf16.xpose.msra.mxu0 0
          %828 = vmatprep.subr.bf16.mxu0 0
          %829 = vmatpush2.bf16.xpose.msra.mxu0 0
          %830 = vmatprep.subr.bf16.mxu0 0
          %831 = vmatpush2.bf16.xpose.msra.mxu0 0
          %832 = vmatprep.mubr.bf16.mxu0 0
          %833 = vmatmul.mubr.bf16.gmra.mxu0 %v798
          %v834 = vpop.f32.mrf.mxu0
          %v835 = vadd.f32 0.0, %v834
          %v836 = vpop.f32.mrf.mxu0
          %v837 = vpop.f32.mrf.mxu0
          %v838 = vadd.f32 0.0, %v837
          %v839 = vpop.f32.mrf.mxu0
          %840 = vdwg.mxu0
          %s841 = smul.u32 %s29, 16
          %v842 = vlaneseq
          %v843 = vshrl.u32 %v842, 7
          %v844 = vadd.s32 %v843, 8
          %v845 = vstv %s841
          %v846 = vadd.s32 %v845, %v843
          %v847 = vadd.s32 %v845, %v844
          %s848 = smul.u32 %s30, 16
          %v849 = vlaneseq
          %v850 = vand.u32 %v849, 127
          %v851 = vstv %s848
          %v852 = vadd.s32 %v851, %v850
          %vm853 = vcmp.le.s32.totalorder %v852, %v846
          %vm854 = vcmp.le.s32.totalorder %v852, %v847
          %v855 = vsel %vm853, %v835, -inf
          %v856 = vsel %vm854, %v838, -inf
          %v857 = vld [vmem:[#allocation5] sm:$0xff]
          %v858 = vld [vmem:[#allocation5 + $0x8] sm:$0xff]
          %vm859 = vcmask 130048
          %v860 = vsel %vm859, %v855, -inf
          %861 = vmax.xlane.f32.xlu0 %v860
          %v862 = vpop.xlane.xlu0 %861
          %v863 = vsel %vm859, %v856, -inf
          %864 = vmax.xlane.f32.xlu0 %v863
          %v865 = vpop.xlane.xlu0 %864
          %v866 = vmax.f32 %v857, %v862
          %v867 = vmax.f32 %v858, %v865
          %v868 = vsub.f32 %v857, %v866
          %v869 = vsub.f32 %v858, %v867
          %v870 = vmul.f32 %v868, 1.442695
          %v871 = vpow.pop %v870
          %v872 = vmul.f32 %v869, 1.442695
          %v873 = vpow.pop %v872
          %875 = vset.pattern.permute.xlu0 0
          %876 = vperm.xlu0 %875, %v866
          %v877 = vpop.permute.xlu0 %876
          %880 = vset.pattern.permute.xlu0 0
          %881 = vperm.xlu0 %880, %v867
          %v882 = vpop.permute.xlu0 %881
          %v884 = vsub.f32 %v855, %v877
          %v885 = vsub.f32 %v856, %v882
          %v886 = vmul.f32 %v884, 1.442695
          %v887 = vpow.pop %v886
          %v888 = vmul.f32 %v885, 1.442695
          %v889 = vpow.pop %v888
          %v890 = vld [vmem:[#allocation6] sm:$0xff]
          %v891 = vld [vmem:[#allocation6 + $0x8] sm:$0xff]
          %v892 = vmul.f32 %v871, %v890
          %v893 = vmul.f32 %v873, %v891
          %v894 = vsel %vm859, %v887, 0.0
          %895 = vadd.xlane.f32.xlu0 %v894
          %v896 = vpop.xlane.xlu0 %895
          %v897 = vsel %vm859, %v889, 0.0
          %898 = vadd.xlane.f32.xlu0 %v897
          %v899 = vpop.xlane.xlu0 %898
          %v900 = vadd.f32 %v892, %v896
          %v901 = vadd.f32 %v893, %v899
          %vm902 = vcmask 7168
          %903 = vst.msk [vmem:[#allocation6] sm:$0xff] %vm902, %v900
          %904 = vst.msk [vmem:[#allocation6 + $0x8] sm:$0xff] %vm902, %v901
          %v905 = vld [vmem:[#allocation7] sm:$0xff]
          %v906 = vld [vmem:[#allocation7 + $0x8] sm:$0xff]
          %908 = vset.pattern.permute.xlu0 0
          %909 = vperm.xlu0 %908, %v871
          %v910 = vpop.permute.xlu0 %909
          %913 = vset.pattern.permute.xlu0 0
          %914 = vperm.xlu0 %913, %v873
          %v915 = vpop.permute.xlu0 %914
          %v917 = vmul.f32 %v910, %v905
          %v918 = vmul.f32 %v915, %v906
          %v919 = vpack.c.bf16 %v889, %v887
          %v921 = vsel %vm859, %v919, 0
          %923 = vmatprep.subr.bf16.mxu0 0
          %924 = vmatpush1.bf16.msra.mxu0 0
          %925 = vmatprep.subr.bf16.mxu0 0
          %926 = vmatpush1.bf16.msra.mxu0 0
          %927 = vmatprep.subr.bf16.mxu0 0
          %928 = vmatpush1.bf16.msra.mxu0 0
          %929 = vmatprep.subr.bf16.mxu0 0
          %930 = vmatpush1.bf16.msra.mxu0 0
          %931 = vmatprep.subr.bf16.mxu0 0
          %932 = vmatpush1.bf16.msra.mxu0 0
          %933 = vmatprep.subr.bf16.mxu0 0
          %934 = vmatpush1.bf16.msra.mxu0 0
          %935 = vmatprep.subr.bf16.mxu0 0
          %936 = vmatpush1.bf16.msra.mxu0 0
          %937 = vmatprep.subr.bf16.mxu0 0
          %938 = vmatpush1.bf16.msra.mxu0 %v768
          %939 = vmatprep.subr.bf16.mxu0 0
          %940 = vmatpush2.bf16.msra.mxu0 0
          %941 = vmatprep.subr.bf16.mxu0 0
          %942 = vmatpush2.bf16.msra.mxu0 0
          %943 = vmatprep.subr.bf16.mxu0 0
          %944 = vmatpush2.bf16.msra.mxu0 0
          %945 = vmatprep.subr.bf16.mxu0 0
          %946 = vmatpush2.bf16.msra.mxu0 0
          %947 = vmatprep.subr.bf16.mxu0 0
          %948 = vmatpush2.bf16.msra.mxu0 0
          %949 = vmatprep.subr.bf16.mxu0 0
          %950 = vmatpush2.bf16.msra.mxu0 0
          %951 = vmatprep.subr.bf16.mxu0 0
          %952 = vmatpush2.bf16.msra.mxu0 0
          %953 = vmatprep.subr.bf16.mxu0 0
          %954 = vmatpush2.bf16.msra.mxu0 0
          %955 = vmatprep.mubr.bf16.mxu0 0
          %956 = vmatmul.mubr.bf16.gmra.mxu0 %v921
          %v957 = vpop.f32.mrf.mxu0
          %v958 = vadd.f32 0.0, %v957
          %v959 = vpop.f32.mrf.mxu0
          %v960 = vpop.f32.mrf.mxu0
          %v961 = vadd.f32 0.0, %v960
          %v962 = vpop.f32.mrf.mxu0
          %963 = vdwg.mxu0
          %v964 = vadd.f32 %v917, %v958
          %v965 = vadd.f32 %v918, %v961
          %966 = vst [vmem:[#allocation7] sm:$0xff] %v964
          %967 = vst [vmem:[#allocation7 + $0x8] sm:$0xff] %v965
          %968 = vst.msk [vmem:[#allocation5] sm:$0xff] %vm902, %v866
          %969 = vst.msk [vmem:[#allocation5 + $0x8] sm:$0xff] %vm902, %v867
        $region56: #{tpu_custom_call.1} parent=31 // pred_fallthru
          _
        %p970 = scmp.eq.s32.totalorder %s30, %s29
        // Predicated region
        $region57: #{tpu_custom_call.1} parent=31 // pred_check
          %p971 = pneg %p970
        $region58: #{tpu_custom_call.1} parent=31 // pred_check_branch
          %973 = sbr.rel (%p971) target = $region60
        $region59: #{tpu_custom_call.1} parent=31 // pred_region
          %v974 = vld [vmem:[#allocation6] sm:$0xff]
          %v975 = vld [vmem:[#allocation6 + $0x8] sm:$0xff]
          %v976 = vrcp.pop %v974
          %v977 = vrcp.pop %v975
          %v978 = vld [vmem:[#allocation7] sm:$0xff]
          %v979 = vld [vmem:[#allocation7 + $0x8] sm:$0xff]
          %981 = vset.pattern.permute.xlu0 0
          %982 = vperm.xlu0 %981, %v976
          %v983 = vpop.permute.xlu0 %982
          %986 = vset.pattern.permute.xlu0 0
          %987 = vperm.xlu0 %986, %v977
          %v988 = vpop.permute.xlu0 %987
          %v990 = vmul.f32 %v978, %v983
          %v991 = vmul.f32 %v979, %v988
          %v992 = vpack.c.bf16 %v991, %v990
          %v994 = vunpack.c.l.b16 %v992
          %v995 = vunpack.c.h.b16 %v992
          %v996 = vpack.c.b16 %v994, %v994
          %v997 = vpack.c.b16 %v995, %v995
          %1000 = vst [vmem:[%s283] sm:$0xf] %v996
          %1001 = vst [vmem:[%s283 + $0x4] sm:$0xf] %v997
        $region60: #{tpu_custom_call.1} parent=31 // pred_fallthru
          _
        %s1002 = sand.u32 %s137, 1
        %s1003 = scalar_lea.sflag [#allocation10], %s1002
        %s1004 = sand.u32 %s137, 1
        %s1005 = smul.addr %s1004, 8
        %s1006 = scalar_lea.vmem [#allocation14], %s1005
        // Predicated region
        $region61: #{tpu_custom_call.1} parent=31 // pred_check
          %p1007 = pneg %p147
        $region62: #{tpu_custom_call.1} parent=31 // pred_check_branch
          %1009 = sbr.rel (%p1007) target = $region64
        $region63: #{tpu_custom_call.1} parent=31 // pred_region
          %s1010 = smul.u32 2, %s29
          %s1012 = ssub.s32 128, 128
          %1013 = vsyncadd %s1003, %s1012
          %s1014 = smul.addr %s28, 2
          %s1015 = sadd.s32 %s1010, %s1014
          %s1016 = smul.addr %s1015, 64
          %s1017 = scalar_lea.hbm %s3, %s1016
          %s1018 = sshll.u32 %s1006, 4
          %s1019 = int_to_ptr.vmem [resolvable:$true] %s1018
          %1024 = dma.vmem_to_hbm [thread:$0]  %s1019, 128, %s1017, %s1003, 64, 64, 4
        $region64: #{tpu_custom_call.1} parent=31 // pred_fallthru
          _
      $region32: #{tpu_custom_call.1} parent=5 // pred_fallthru
        _
      %p1025 = scmp.le.s32.totalorder 2, %s18
      // Predicated region
      $region65: #{tpu_custom_call.1} parent=5 // pred_check
        %p1026 = pneg %p1025
      $region66: #{tpu_custom_call.1} parent=5 // pred_check_branch
        %1028 = sbr.rel (%p1026) target = $region68
      $region67: #{tpu_custom_call.1} parent=5 // pred_region
        %s1029 = ssub.s32 %s18, 2
        // Predicated region
        $region69: #{tpu_custom_call.1} parent=67 // pred_check
          %p1030 = pneg %p153
        $region70: #{tpu_custom_call.1} parent=67 // pred_check_branch
          %1032 = sbr.rel (%p1030) target = $region72
        $region71: #{tpu_custom_call.1} parent=67 // pred_region
          %s1033 = sand.u32 %s138, 1
          %s1034 = scalar_lea.sflag [#allocation10], %s1033
          %s1035 = sand.u32 %s138, 1
          %s1036 = smul.addr %s1035, 8
          %s1037 = scalar_lea.vmem [#allocation14], %s1036
          %1038 = dma.done %s1034, 128
        $region72: #{tpu_custom_call.1} parent=67 // pred_fallthru
          _
      $region68: #{tpu_custom_call.1} parent=5 // pred_fallthru
        _
    $region6: #{tpu_custom_call.1} parent=1 // loop_footer
      %s22 = sadd.s32 1, %s18
    $region7: #{tpu_custom_call.1} parent=1 // loop_footer_branch
      %17 = sbr.rel target = $region3
    $region8: #{tpu_custom_call.1} parent=1 // loop_exit
      _
    %1039 = vsyncpa [#allocation9], 1
    %s1040 = scalar_lea.sflag [#allocation9], 1
    %1041 = vsyncpa %s1040, 1
    %1042 = vsyncpa [#allocation12], 1
    %s1043 = scalar_lea.sflag [#allocation12], 1
    %1044 = vsyncpa %s1043, 1
    %1045 = vsyncpa [#allocation10], 1
    %s1046 = scalar_lea.sflag [#allocation10], 1
    %1047 = vsyncpa %s1046, 1

</llo_original>
